<compile_context>
chip_gen: v5e
topology: v5e:2x2
jax: 0.10.0
libtpu: 0.0.40
codegen_flags: <defaults>
</compile_context>

<pallas_src>
import numpy as np
import jax
import jax.numpy as jnp
from jax.experimental import pallas as pl
from jax.experimental.pallas import tpu as pltpu


# ------------------------------------------------------------------ numpy glue
def _adaptive_pool_matrix(in_size, out_size):
    """(in_size, out_size); column i averages the rows of adaptive bin i
    (PyTorch rule: [floor(i*H/L), ceil((i+1)*H/L)) )."""
    m = np.zeros((in_size, out_size), dtype=np.float32)
    for i in range(out_size):
        start = (i * in_size) // out_size
        end = -((-(i + 1) * in_size) // out_size)  # ceil
        m[start:end, i] = 1.0 / (end - start)
    return m


def _bilinear_upsample_matrix(out_size, in_size):
    """(out_size, in_size); row h holds bilinear weights, align_corners=True."""
    m = np.zeros((out_size, in_size), dtype=np.float32)
    if in_size == 1:
        m[:, 0] = 1.0
        return m
    scale = (in_size - 1) / (out_size - 1) if out_size > 1 else 0.0
    for h in range(out_size):
        src = h * scale
        i0 = min(int(np.floor(src)), in_size - 1)
        i1 = min(i0 + 1, in_size - 1)
        frac = src - i0
        m[h, i0] += 1.0 - frac
        m[h, i1] += frac
    return m


def _pick_tile_c(cin):
    for t in (512, 256, 128, 64, 32, 16, 8):
        if t <= cin and cin % t == 0:
            return t
    return cin


def _pick_tile_s(s):
    """Largest lane-dense tile whose S padding overhead stays small."""
    s128 = -(-s // 128) * 128
    for t in (4096, 2048, 1024, 512, 256, 128):
        padded = -(-s // t) * t
        if t <= s128 and padded - s128 <= max(s128 // 8, 128):
            return t
    return 128


def _vmem_limit_bytes():
    cap = 64 * 1024 * 1024                      # conservative default (v7x)
    try:
        cap = int(getattr(pltpu.get_tpu_info(), "vmem_capacity_bytes", cap))
    except Exception:
        pass
    # v5e/v6e (128 MiB physical) -> 96 MiB; v7x (64 MiB physical) -> 48 MiB.
    return int(min(96 * 1024 * 1024, cap * 3 // 4))


# ------------------------------------------- pass 1: adaptive average pooling
def _make_pool_kernel(tile_s):
    def pool_kernel(x_ref, poolm_ref, pooled_ref):
        # x_ref      : (1, tile_c, tile_s)   spatial/channel tile of one sample
        # poolm_ref  : (S_pad, P)            VMEM-resident pooling matrix
        # pooled_ref : (1, tile_c, P) f32    accumulated over the ks axis
        ks = pl.program_id(2)

        @pl.when(ks == 0)
        def _():
            pooled_ref[...] = jnp.zeros_like(pooled_ref)

        start = pl.multiple_of(ks * tile_s, tile_s)
        pm = poolm_ref[pl.ds(start, tile_s), :]              # (tile_s, P)
        pooled_ref[0] += jnp.dot(x_ref[0], pm,
                                 preferred_element_type=jnp.float32)
    return pool_kernel


# --------------------------------------------------- pass 2: bilinear upsample
def upsample_kernel(z_ref, upm_ref, o_ref):
    # z_ref  : (1, Cout, P)      post conv/BN/ReLU map for this sample
    # upm_ref: (P, tile_s)       bilinear upsample slab (align_corners=True)
    # o_ref  : (1, Cout, tile_s) lane-dense output tile
    o_ref[0] = jnp.dot(z_ref[0], upm_ref[...],
                       preferred_element_type=jnp.float32).astype(o_ref.dtype)


# --------------------------------------------------------------------- wrapper
def psp_block(x, w, gamma, beta, levels, *, tile_c=None, tile_s=None, eps=1e-5):
    N, Cin, H, W = x.shape
    S = H * W
    P = levels * levels
    w = jnp.asarray(w, jnp.float32).reshape(np.shape(w)[0], -1)   # (Cout, Cin)
    Cout = w.shape[0]
    gamma = jnp.asarray(gamma, jnp.float32).reshape(-1)           # (Cout,)
    beta = jnp.asarray(beta, jnp.float32).reshape(-1)             # (Cout,)

    if tile_c is None:
        tile_c = _pick_tile_c(Cin)
    if tile_s is None:
        tile_s = _pick_tile_s(S)
    assert Cin % tile_c == 0 and (tile_c % 8 == 0 or tile_c == Cin)
    assert tile_s % 128 == 0
    S_pad = -(-S // tile_s) * tile_s       # lane-dense S; no full-S fallback

    # Separable pool / upsample factors combined into dense (S,P)/(P,S) maps,
    # zero-padded along S so the padded region contributes nothing.
    # TODO(synk): keep pool/upsample separable in-kernel (two skinny matmuls)
    # once the passes stop being purely HBM-bound.
    ph = _adaptive_pool_matrix(H, levels)
    pw = _adaptive_pool_matrix(W, levels)
    poolm = np.zeros((S_pad, P), np.float32)
    poolm[:S] = np.einsum('hi,wj->hwij', ph, pw).reshape(S, P)
    uh = _bilinear_upsample_matrix(H, levels)
    uw = _bilinear_upsample_matrix(W, levels)
    upm = np.zeros((P, S_pad), np.float32)
    upm[:, :S] = np.einsum('hi,wj->ijhw', uh, uw).reshape(P, S)
    poolm = jnp.asarray(poolm)
    upm = jnp.asarray(upm)

    x_flat = jnp.asarray(x, jnp.float32).reshape(N, Cin, S)
    if S_pad != S:
        x_flat = jnp.pad(x_flat, ((0, 0), (0, 0), (0, S_pad - S)))

    vmem_limit = _vmem_limit_bytes()

    # ---- pass 1: adaptive avg pool (streamed matmul) -> pooled (N, Cin, P)
    pooled = pl.pallas_call(
        _make_pool_kernel(tile_s),
        out_shape=jax.ShapeDtypeStruct((N, Cin, P), jnp.float32),
        grid=(N, Cin // tile_c, S_pad // tile_s),
        in_specs=[
            pl.BlockSpec((1, tile_c, tile_s), lambda n, kc, ks: (n, kc, ks)),
            pl.BlockSpec((S_pad, P), lambda n, kc, ks: (0, 0)),  # resident
        ],
        out_specs=pl.BlockSpec((1, tile_c, P), lambda n, kc, ks: (n, kc, 0)),
        compiler_params=pltpu.CompilerParams(
            dimension_semantics=("parallel", "parallel", "arbitrary"),
            vmem_limit_bytes=vmem_limit),
    )(x_flat, poolm)

    # ---- XLA glue on the tiny (N, Cout, P) map: 1x1 conv (no bias), BN with
    # batch statistics (biased variance) folded into scale/shift, ReLU.
    y = jnp.einsum('oc,ncp->nop', w, pooled)                  # (N, Cout, P)
    mean = jnp.mean(y, axis=(0, 2), keepdims=True)
    var = jnp.mean(jnp.square(y - mean), axis=(0, 2), keepdims=True)
    scale = gamma[None, :, None] * jax.lax.rsqrt(var + eps)
    shift = beta[None, :, None] - mean * scale
    z = jnp.maximum(y * scale + shift, 0.0)                   # (N, Cout, P)

    # ---- pass 2: bilinear upsample (streamed matmul), lane-dense output
    out_flat = pl.pallas_call(
        upsample_kernel,
        out_shape=jax.ShapeDtypeStruct((N, Cout, S_pad), jnp.float32),
        grid=(N, S_pad // tile_s),
        in_specs=[
            pl.BlockSpec((1, Cout, P), lambda n, si: (n, 0, 0)),
            pl.BlockSpec((P, tile_s), lambda n, si: (0, si)),
        ],
        out_specs=pl.BlockSpec((1, Cout, tile_s), lambda n, si: (n, 0, si)),
        compiler_params=pltpu.CompilerParams(
            dimension_semantics=("parallel", "parallel"),
            vmem_limit_bytes=vmem_limit),
    )(z, upm)

    if S_pad != S:
        out_flat = out_flat[:, :, :S]
    return out_flat.reshape(N, Cout, H, W)


# ---------------------------------------------------------------- pure-JAX ref
def psp_ref(x, w, gamma, beta, levels):
    N, Cin, H, W = x.shape
    S = H * W
    P = levels * levels
    ph = _adaptive_pool_matrix(H, levels)
    pw = _adaptive_pool_matrix(W, levels)
    poolm = jnp.asarray(np.einsum('hi,wj->hwij', ph, pw).reshape(S, P))
    uh = _bilinear_upsample_matrix(H, levels)
    uw = _bilinear_upsample_matrix(W, levels)
    upm = jnp.asarray(np.einsum('hi,wj->ijhw', uh, uw).reshape(P, S))

    xf = x.reshape(N, Cin, S)
    pooled = jnp.einsum('ncs,sp->ncp', xf, poolm)
    y = jnp.einsum('oc,ncp->nop', w, pooled)
    mean = jnp.mean(y, axis=(0, 2), keepdims=True)
    var = jnp.mean((y - mean) ** 2, axis=(0, 2), keepdims=True)
    z = (y - mean) * jax.lax.rsqrt(var + 1e-5) * gamma[None, :, None] \
        + beta[None, :, None]
    z = jnp.maximum(z, 0.0)
    out = jnp.einsum('nop,ps->nos', z, upm)
    return out.reshape(N, w.shape[0], H, W)


if __name__ == "__main__":
    # Small shapes consistent with the module's forward.
    N, Cin, H, W = 2, 16, 16, 16
    levels = 3
    Cout = 8  # out_planes (scaled down from the default 512 for this test)

    key = jax.random.PRNGKey(0)
    k_x, k_w = jax.random.split(key)
    x = jax.random.normal(k_x, (N, Cin, H, W), dtype=jnp.float32)
    # conv1x1 weight (Cout, Cin), no bias
    w = jax.random.normal(k_w, (Cout, Cin), dtype=jnp.float32) / np.sqrt(Cin)
    # BatchNorm2d default parameter init (natural (Cout,) vectors accepted)
    gamma = jnp.ones((Cout,), jnp.float32)
    beta = jnp.zeros((Cout,), jnp.float32)

    # Small explicit tiles so the multi-step reduction / multi-tile output
    # paths are exercised at these toy shapes (defaults would pick 16 / 256).
    out = psp_block(x, w, gamma, beta, levels, tile_c=8, tile_s=128)
    out = jax.block_until_ready(out)

    ref = jax.block_until_ready(psp_ref(x, w, gamma, beta, levels))

    # f32 everywhere now -> tight tolerance (only accumulation-order noise).
    np.testing.assert_allclose(np.asarray(out), np.asarray(ref),
                               rtol=1e-4, atol=1e-4)
    print("KERNEL_OK")
</pallas_src>

<mosaic_0001>
module attributes {stable_mosaic.version = 11 : i64} {
  func.func @pool_kernel(%arg0: i32, %arg1: i32, %arg2: i32, %arg3: memref<1x8x128xf32, #tpu.memory_space<vmem>>, %arg4: memref<256x9xf32, #tpu.memory_space<vmem>>, %arg5: memref<1x8x9xf32, #tpu.memory_space<vmem>>) attributes {dimension_semantics = [#tpu.dimension_semantics<parallel>, #tpu.dimension_semantics<parallel>, #tpu.dimension_semantics<arbitrary>], iteration_bounds = array<i64: 2, 2, 2>, scalar_prefetch = 0 : i64, scratch_operands = 0 : i64, tpu.core_type = #tpu.core_type<tc>, window_params = [{transform_indices = @transform_0, window_bounds = array<i64: 1, 8, 128>}, {pipeline_mode = #tpu.pipeline_mode<synchronous>, transform_indices = @transform_1, window_bounds = array<i64: 256, 9>}, {transform_indices = @transform_2, window_bounds = array<i64: 1, 8, 9>}]} {
    %c0_i32 = arith.constant 0 : i32
    %0 = arith.cmpi eq, %arg2, %c0_i32 : i32
    %1 = arith.extui %0 : i1 to i32
    %c0_i32_0 = arith.constant 0 : i32
    %2 = arith.cmpi ne, %1, %c0_i32_0 : i32
    scf.if %2 {
      %cst_10 = arith.constant 0.000000e+00 : f32
      %16 = vector.broadcast %cst_10 : f32 to vector<1x8x9xf32>
      %c0_11 = arith.constant 0 : index
      %c0_12 = arith.constant 0 : index
      %c0_13 = arith.constant 0 : index
      %17 = vector.load %arg5[%c0_11, %c0_12, %c0_13] : memref<1x8x9xf32, #tpu.memory_space<vmem>>, vector<1x8x9xf32>
      tpu.vector_store %arg5[%c0_11, %c0_12, %c0_13], %16 {strides = array<i32>} : memref<1x8x9xf32, #tpu.memory_space<vmem>>, vector<1x8x9xf32>,
    } else {
    }
    %c128_i32 = arith.constant 128 : i32
    %3 = arith.muli %arg2, %c128_i32 : i32
    %4 = tpu.assume_multiple %3, 128 : i32
    %5 = arith.index_cast %4 : i32 to index
    %c0 = arith.constant 0 : index
    %6 = vector.load %arg4[%5, %c0] : memref<256x9xf32, #tpu.memory_space<vmem>>, vector<128x9xf32>
    %c0_1 = arith.constant 0 : index
    %c0_2 = arith.constant 0 : index
    %c0_3 = arith.constant 0 : index
    %7 = vector.load %arg5[%c0_1, %c0_2, %c0_3] : memref<1x8x9xf32, #tpu.memory_space<vmem>>, vector<1x8x9xf32>
    %8 = vector.shape_cast %7 : vector<1x8x9xf32> to vector<8x9xf32>
    %c0_4 = arith.constant 0 : index
    %c0_5 = arith.constant 0 : index
    %c0_6 = arith.constant 0 : index
    %9 = vector.load %arg3[%c0_4, %c0_5, %c0_6] : memref<1x8x128xf32, #tpu.memory_space<vmem>>, vector<1x8x128xf32>
    %10 = vector.shape_cast %9 : vector<1x8x128xf32> to vector<8x128xf32>
    %cst = arith.constant dense<0.000000e+00> : vector<8x9xf32>
    %11 = tpu.matmul %10, %6, %cst {dimension_numbers = #tpu.dot_dimension_numbers<[1], [0], [0], [1], [0, 0, 1, 1], [], []>} : vector<8x128xf32>, vector<128x9xf32>, vector<8x9xf32> -> vector<8x9xf32>
    %12 = arith.addf %8, %11 : vector<8x9xf32>
    %c0_7 = arith.constant 0 : index
    %c0_8 = arith.constant 0 : index
    %c0_9 = arith.constant 0 : index
    %13 = vector.load %arg5[%c0_7, %c0_8, %c0_9] : memref<1x8x9xf32, #tpu.memory_space<vmem>>, vector<1x8x9xf32>
    %14 = vector.shape_cast %13 : vector<1x8x9xf32> to vector<8x9xf32>
    %15 = vector.shape_cast %12 : vector<8x9xf32> to vector<1x8x9xf32>
    tpu.vector_store %arg5[%c0_7, %c0_8, %c0_9], %15 {strides = array<i32>} : memref<1x8x9xf32, #tpu.memory_space<vmem>>, vector<1x8x9xf32>,
    return
  }
  func.func @transform_0(%arg0: i32, %arg1: i32, %arg2: i32) -> (i32, i32, i32) {
    %c0_i32 = arith.constant 0 : i32
    return %arg0, %arg1, %arg2 : i32, i32, i32
  }
  func.func @transform_1(%arg0: i32, %arg1: i32, %arg2: i32) -> (i32, i32) {
    %c0_i32 = arith.constant 0 : i32
    %c0_i32_0 = arith.constant 0 : i32
    %c0_i32_1 = arith.constant 0 : i32
    return %c0_i32, %c0_i32_0 : i32, i32
  }
  func.func @transform_2(%arg0: i32, %arg1: i32, %arg2: i32) -> (i32, i32, i32) {
    %c0_i32 = arith.constant 0 : i32
    %c0_i32_0 = arith.constant 0 : i32
    return %arg0, %arg1, %c0_i32 : i32, i32, i32
  }
}

</mosaic_0001>

<llo_original>
// kernel: tpu_custom_call.1
$region0: #{tpu_custom_call.1}
  #allocation0 [shape = 'u32[]', space=smem, size = 0x4, offset = 0x4, fixed_abs, tag = 'smem constant byte address 0x4 - core index']
  #allocation1 [shape = 'u32[72,128]{1,0:T(1,128)}', space=vmem, size = 0x9000, scoped, tag = 'internal scratch']
  %s0 = inlined_call_operand.vmem [shape: f32[2,16,256], index: 0, kind: input, shape index: {}]
  %s1 = inlined_call_operand.vmem [shape: f32[256,9], index: 1, kind: input, shape index: {}]
  %s2 = inlined_call_operand.vmem [shape: f32[2,16,9], index: 2, kind: output, shape index: {}]
  %s3 = sld [smem:[#allocation0]]
  $region45: #{tpu_custom_call.1} parent=0
    _
  %s5 = ssub.s32 1, %s3
  %s6 = scalar_select 0, %s5, %s3
  loop: start=0, step=1, limit=10
  $region2: #{tpu_custom_call.1} parent=0 // loop_pre_header
    _
  $region3: #{tpu_custom_call.1} parent=0 // loop_header
    %s8 = sphi 0, %s12
    %p9 = scmp.ge.s32.totalorder %s8, 10
    %s15 = sphi 0, %s34
    %s16 = sphi 0, %s30
    %s17 = sphi 0, %s26
    %s18 = sphi 0, %s15
    %s19 = sphi 0, %s16
    %s20 = sphi 0, %s17
    %s21 = sphi 0, %s18
    %s22 = sphi 0, %s19
    %s23 = sphi 0, %s20
    %s41 = sphi 0, %s43
    %s44 = sphi 0, %s41
    %s45 = sphi 0, %s44
    %s61 = sphi 0, %s45
    %s65 = sphi 0, %s65
    %s67 = sphi 0, %s65
    %s68 = sphi 0, %s67
    %s82 = sphi 0, %s68
    %s90 = sphi 0, %s92
    %s93 = sphi 0, %s90
    %s94 = sphi 0, %s93
    %s110 = sphi 0, %s94
  $region4: #{tpu_custom_call.1} parent=0 // loop_header_branch
    %11 = sbr.rel (%p9) target = $region8
  $region5: #{tpu_custom_call.1} parent=0 // loop_body
    %s13 = ssub.s32 %s8, 1
    %s14 = ssub.s32 %s8, 2
    %s24 = sadd.s32 1, %s17
    %p25 = scmp.ge.s32.totalorder %s24, 2
    %s26 = scalar_select %p25, 0, %s24
    %s27 = sadd.s32 1, %s16
    %s28 = scalar_select %p25, %s27, %s16
    %p29 = scmp.ge.s32.totalorder %s28, 2
    %s30 = scalar_select %p29, 0, %s28
    %s31 = sadd.s32 1, %s15
    %s32 = scalar_select %p29, %s31, %s15
    %p33 = scmp.ge.s32.totalorder %s32, 2
    %s34 = scalar_select %p33, 0, %s32
    %s35 = ssub.s32 %s15, %s34
    %s36 = ssub.s32 %s16, %s30
    %s37 = sor.u32 %s35, %s36
    %s38 = ssub.s32 %s17, %s26
    %s39 = sor.u32 %s37, %s38
    %p40 = scmp.eq.s32.totalorder %s39, 0
    %s42 = sadd.s32 %s41, 1
    %s43 = scalar_select %p40, %s41, %s42
    %p46 = pneg %p40
    %p47 = scmp.eq.s32.totalorder %s8, 7
    %p48 = por %p46, %p47
    %p49 = scmp.ne.s32.totalorder %s41, %s44
    %p50 = scmp.eq.s32.totalorder %s8, 0
    %p51 = por %p49, %p50
    %p52 = scmp.ne.s32.totalorder %s41, %s44
    %p53 = scmp.eq.s32.totalorder %s13, 7
    %p54 = por %p52, %p53
    %p55 = scmp.ne.s32.totalorder %s44, %s45
    %p56 = scmp.eq.s32.totalorder %s13, 0
    %p57 = por %p55, %p56
    %p58 = scmp.ne.s32.totalorder %s44, %s45
    %p59 = scmp.eq.s32.totalorder %s14, 7
    %p60 = por %p58, %p59
    %p62 = scmp.ne.s32.totalorder %s45, %s61
    %p63 = scmp.eq.s32.totalorder %s14, 0
    %p64 = por %p62, %p63
    %s66 = sadd.s32 %s65, 1
    %p69 = scmp.eq.s32.totalorder %s8, 7
    %p70 = scmp.ne.s32.totalorder %s65, %s67
    %p71 = scmp.eq.s32.totalorder %s8, 0
    %p72 = por %p70, %p71
    %p73 = scmp.ne.s32.totalorder %s65, %s67
    %p74 = scmp.eq.s32.totalorder %s13, 7
    %p75 = por %p73, %p74
    %p76 = scmp.ne.s32.totalorder %s67, %s68
    %p77 = scmp.eq.s32.totalorder %s13, 0
    %p78 = por %p76, %p77
    %p79 = scmp.ne.s32.totalorder %s67, %s68
    %p80 = scmp.eq.s32.totalorder %s14, 7
    %p81 = por %p79, %p80
    %p83 = scmp.ne.s32.totalorder %s68, %s82
    %p84 = scmp.eq.s32.totalorder %s14, 0
    %p85 = por %p83, %p84
    %s86 = ssub.s32 %s15, %s34
    %s87 = ssub.s32 %s16, %s30
    %s88 = sor.u32 %s86, %s87
    %p89 = scmp.eq.s32.totalorder %s88, 0
    %s91 = sadd.s32 %s90, 1
    %s92 = scalar_select %p89, %s90, %s91
    %p95 = pneg %p89
    %p96 = scmp.eq.s32.totalorder %s8, 7
    %p97 = por %p95, %p96
    %p98 = scmp.ne.s32.totalorder %s90, %s93
    %p99 = scmp.eq.s32.totalorder %s8, 0
    %p100 = por %p98, %p99
    %p101 = scmp.ne.s32.totalorder %s90, %s93
    %p102 = scmp.eq.s32.totalorder %s13, 7
    %p103 = por %p101, %p102
    %p104 = scmp.ne.s32.totalorder %s93, %s94
    %p105 = scmp.eq.s32.totalorder %s13, 0
    %p106 = por %p104, %p105
    %p107 = scmp.ne.s32.totalorder %s93, %s94
    %p108 = scmp.eq.s32.totalorder %s14, 7
    %p109 = por %p107, %p108
    %p111 = scmp.ne.s32.totalorder %s94, %s110
    %p112 = scmp.eq.s32.totalorder %s14, 0
    %p113 = por %p111, %p112
    %p114 = scmp.le.s32.totalorder 1, %s8
    %p115 = scmp.lt.s32.totalorder %s8, 9
    %p116 = pnand %p114, %p115
    %p117 = pneg %p116
    // Predicated region
    $region9: #{tpu_custom_call.1} parent=5 // pred_check
      _
    $region10: #{tpu_custom_call.1} parent=5 // pred_check_branch
      %119 = sbr.rel (%p116) target = $region12
    $region11: #{tpu_custom_call.1} parent=5 // pred_region
      %s120 = ssub.s32 %s8, 1
      // Predicated region
      $region13: #{tpu_custom_call.1} parent=11 // pred_check
        %p121 = pneg %p78
      $region14: #{tpu_custom_call.1} parent=11 // pred_check_branch
        %123 = sbr.rel (%p121) target = $region16
      $region15: #{tpu_custom_call.1} parent=11 // pred_region
        _
      $region16: #{tpu_custom_call.1} parent=11 // pred_fallthru
        _
    $region12: #{tpu_custom_call.1} parent=5 // pred_fallthru
      _
    %p124 = scmp.lt.s32.totalorder %s8, 8
    // Predicated region
    $region17: #{tpu_custom_call.1} parent=5 // pred_check
      %p125 = pneg %p124
    $region18: #{tpu_custom_call.1} parent=5 // pred_check_branch
      %127 = sbr.rel (%p125) target = $region20
    $region19: #{tpu_custom_call.1} parent=5 // pred_region
      // Predicated region
      $region21: #{tpu_custom_call.1} parent=19 // pred_check
        %p128 = pneg %p51
      $region22: #{tpu_custom_call.1} parent=19 // pred_check_branch
        %130 = sbr.rel (%p128) target = $region24
      $region23: #{tpu_custom_call.1} parent=19 // pred_region
        %p131 = scmp.lt.s32.totalorder %s15, 1
        %s132 = scalar_select %p131, %s15, 1
        %p133 = scmp.lt.s32.totalorder %s16, 1
        %s134 = scalar_select %p133, %s16, 1
        %p135 = scmp.lt.s32.totalorder %s17, 1
        %s136 = scalar_select %p135, %s17, 1
        %s137 = smul.addr %s134, 2
        %s138 = sadd.s32 %s136, %s137
        %s139 = smul.addr %s132, 4
        %s140 = sadd.s32 %s138, %s139
        %s141 = smul.addr %s140, 8
        %s142 = scalar_lea.vmem %s0, %s141
      $region24: #{tpu_custom_call.1} parent=19 // pred_fallthru
        _
    $region20: #{tpu_custom_call.1} parent=5 // pred_fallthru
      _
    %p143 = scmp.le.s32.totalorder 1, %s8
    %p144 = scmp.lt.s32.totalorder %s8, 9
    %p145 = pnand %p143, %p144
    %p146 = pneg %p145
    // Predicated region
    $region25: #{tpu_custom_call.1} parent=5 // pred_check
      _
    $region26: #{tpu_custom_call.1} parent=5 // pred_check_branch
      %148 = sbr.rel (%p145) target = $region28
    $region27: #{tpu_custom_call.1} parent=5 // pred_region
      %s149 = ssub.s32 %s8, 1
      %p150 = scmp.lt.s32.totalorder %s18, 1
      %s151 = scalar_select %p150, %s18, 1
      %p152 = scmp.lt.s32.totalorder %s19, 1
      %s153 = scalar_select %p152, %s19, 1
      %p154 = scmp.lt.s32.totalorder %s20, 1
      %s155 = scalar_select %p154, %s20, 1
      %s156 = smul.addr %s153, 2
      %s157 = sadd.s32 %s155, %s156
      %s158 = smul.addr %s151, 4
      %s159 = sadd.s32 %s157, %s158
      %s160 = smul.addr %s159, 8
      %s161 = scalar_lea.vmem %s0, %s160
      %p162 = pneg %p57
      %p163 = pneg %p54
      %p164 = pneg %p78
      %p165 = pneg %p75
      %p166 = pneg %p106
      %p167 = pneg %p103
      %p168 = scmp.lt.s32.totalorder %s18, 1
      %s169 = scalar_select %p168, %s18, 1
      %p170 = scmp.lt.s32.totalorder %s19, 1
      %s171 = scalar_select %p170, %s19, 1
      %s172 = smul.addr %s169, 2
      %s173 = sadd.s32 %s171, %s172
      %s174 = smul.addr %s173, 8
      %s175 = scalar_lea.vmem %s2, %s174
      %p176 = scmp.lt.s32.totalorder %s18, 1
      %s177 = scalar_select %p176, %s18, 1
      %p178 = scmp.lt.s32.totalorder %s19, 1
      %s179 = scalar_select %p178, %s19, 1
      %p180 = scmp.lt.s32.totalorder %s20, 1
      %s181 = scalar_select %p180, %s20, 1
      %s182 = smul.addr %s179, 2
      %s183 = sadd.s32 %s181, %s182
      %s184 = smul.addr %s177, 4
      %s185 = sadd.s32 %s183, %s184
      %s186 = smul.addr %s185, 8
      %s187 = scalar_lea.vmem %s0, %s186
      %p188 = scmp.lt.s32.totalorder %s18, 1
      %s189 = scalar_select %p188, %s18, 1
      %p190 = scmp.lt.s32.totalorder %s19, 1
      %s191 = scalar_select %p190, %s19, 1
      %s192 = smul.addr %s189, 2
      %s193 = sadd.s32 %s191, %s192
      %s194 = smul.addr %s193, 8
      %s195 = scalar_lea.vmem %s2, %s194
      %p196 = scmp.eq.s32.totalorder %s20, 0
      // Predicated region
      $region29: #{tpu_custom_call.1} parent=27 // pred_check
        %p197 = pneg %p196
      $region30: #{tpu_custom_call.1} parent=27 // pred_check_branch
        %199 = sbr.rel (%p197) target = $region32
      $region31: #{tpu_custom_call.1} parent=27 // pred_region
        %vm200 = vcmask 72704
        %201 = vst.msk [vmem:[%s195] sm:$0xff] %vm200, 0.0
      $region32: #{tpu_custom_call.1} parent=27 // pred_fallthru
        _
      %s202 = smul.u32 %s20, 128
      %s203 = scalar_lea.vmem %s1, %s202
      %v204 = vld [vmem:[%s203] sm:$0xff]
      %v205 = vld [vmem:[%s203 + $0x8] sm:$0xff]
      %v206 = vld [vmem:[%s203 + $0x10] sm:$0xff]
      %v207 = vld [vmem:[%s203 + $0x18] sm:$0xff]
      %v208 = vld [vmem:[%s203 + $0x20] sm:$0xff]
      %v209 = vld [vmem:[%s203 + $0x28] sm:$0xff]
      %v210 = vld [vmem:[%s203 + $0x30] sm:$0xff]
      %v211 = vld [vmem:[%s203 + $0x38] sm:$0xff]
      %v212 = vld [vmem:[%s203 + $0x40] sm:$0xff]
      %v213 = vld [vmem:[%s203 + $0x48] sm:$0xff]
      %v214 = vld [vmem:[%s203 + $0x50] sm:$0xff]
      %v215 = vld [vmem:[%s203 + $0x58] sm:$0xff]
      %v216 = vld [vmem:[%s203 + $0x60] sm:$0xff]
      %v217 = vld [vmem:[%s203 + $0x68] sm:$0xff]
      %v218 = vld [vmem:[%s203 + $0x70] sm:$0xff]
      %v219 = vld [vmem:[%s203 + $0x78] sm:$0xff]
      %v220 = vld [vmem:[%s195] sm:$0xff]
      %v221 = vld [vmem:[%s187] sm:$0xff]
      %222 = vmatpush.msra.mxu0 %v219
      %223 = vmatpush.msra.mxu0 %v218
      %224 = vmatpush.msra.mxu0 %v217
      %225 = vmatpush.msra.mxu0 %v216
      %226 = vmatpush.msra.mxu0 %v215
      %227 = vmatpush.msra.mxu0 %v214
      %228 = vmatpush.msra.mxu0 %v213
      %229 = vmatpush.msra.mxu0 %v212
      %230 = vmatpush.msra.mxu0 %v211
      %231 = vmatpush.msra.mxu0 %v210
      %232 = vmatpush.msra.mxu0 %v209
      %233 = vmatpush.msra.mxu0 %v208
      %234 = vmatpush.msra.mxu0 %v207
      %235 = vmatpush.msra.mxu0 %v206
      %236 = vmatpush.msra.mxu0 %v205
      %237 = vmatpush.msra.mxu0 %v204
      %238 = vmatmul.f32.gmra.mxu0 %v221
      %v239 = vpop.f32.mrf.mxu0
      %v240 = vadd.f32 0.0, %v239
      %241 = vdwg.mxu0
      %v242 = vadd.f32 %v220, %v240
      %vm243 = vcmask 72704
      %244 = vst.msk [vmem:[%s195] sm:$0xff] %vm243, %v242
      %p245 = scmp.lt.s32.totalorder %s18, 1
      %s246 = scalar_select %p245, %s18, 1
      %p247 = scmp.lt.s32.totalorder %s19, 1
      %s248 = scalar_select %p247, %s19, 1
      %s249 = smul.addr %s246, 2
      %s250 = sadd.s32 %s248, %s249
      %s251 = smul.addr %s250, 8
      %s252 = scalar_lea.vmem %s2, %s251
      // Predicated region
      $region33: #{tpu_custom_call.1} parent=27 // pred_check
        %p253 = pneg %p103
      $region34: #{tpu_custom_call.1} parent=27 // pred_check_branch
        %255 = sbr.rel (%p253) target = $region36
      $region35: #{tpu_custom_call.1} parent=27 // pred_region
        _
      $region36: #{tpu_custom_call.1} parent=27 // pred_fallthru
        _
    $region28: #{tpu_custom_call.1} parent=5 // pred_fallthru
      _
    %p256 = scmp.le.s32.totalorder 2, %s8
    // Predicated region
    $region37: #{tpu_custom_call.1} parent=5 // pred_check
      %p257 = pneg %p256
    $region38: #{tpu_custom_call.1} parent=5 // pred_check_branch
      %259 = sbr.rel (%p257) target = $region40
    $region39: #{tpu_custom_call.1} parent=5 // pred_region
      %s260 = ssub.s32 %s8, 2
      // Predicated region
      $region41: #{tpu_custom_call.1} parent=39 // pred_check
        %p261 = pneg %p109
      $region42: #{tpu_custom_call.1} parent=39 // pred_check_branch
        %263 = sbr.rel (%p261) target = $region44
      $region43: #{tpu_custom_call.1} parent=39 // pred_region
        %p264 = scmp.lt.s32.totalorder %s21, 1
        %s265 = scalar_select %p264, %s21, 1
        %p266 = scmp.lt.s32.totalorder %s22, 1
        %s267 = scalar_select %p266, %s22, 1
        %s268 = smul.addr %s265, 2
        %s269 = sadd.s32 %s267, %s268
        %s270 = smul.addr %s269, 8
        %s271 = scalar_lea.vmem %s2, %s270
      $region44: #{tpu_custom_call.1} parent=39 // pred_fallthru
        _
    $region40: #{tpu_custom_call.1} parent=5 // pred_fallthru
      _
  $region6: #{tpu_custom_call.1} parent=0 // loop_footer
    %s12 = sadd.s32 1, %s8
  $region7: #{tpu_custom_call.1} parent=0 // loop_footer_branch
    %7 = sbr.rel target = $region3
  $region8: #{tpu_custom_call.1} parent=0 // loop_exit
    _

</llo_original>
